<compile_context>
chip_gen: v6e
topology: v6e:2x2x1
jax: 0.10.0
libtpu: 0.0.40
codegen_flags: <defaults>
</compile_context>

<pallas_src>
import math

import jax
import jax.numpy as jnp
from jax.experimental import pallas as pl
from jax.experimental.pallas import tpu as pltpu


def _leaky_relu(v, slope=0.01):
    # matches torch.nn.LeakyReLU() default negative_slope=0.01
    return jnp.where(v >= 0, v, slope * v)


def autoencoder_kernel(x_ref,
                       w1_ref, b1_ref,
                       w2_ref, b2_ref,
                       w3_ref, b3_ref,
                       w4_ref, b4_ref,
                       out_ref):
    x = x_ref[...].astype(jnp.float32)

    # encoder
    h = _leaky_relu(
        jnp.dot(x, w1_ref[...], preferred_element_type=jnp.float32) + b1_ref[...])
    h = _leaky_relu(
        jnp.dot(h, w2_ref[...], preferred_element_type=jnp.float32) + b2_ref[...])
    # decoder
    h = _leaky_relu(
        jnp.dot(h, w3_ref[...], preferred_element_type=jnp.float32) + b3_ref[...])
    h = _leaky_relu(
        jnp.dot(h, w4_ref[...], preferred_element_type=jnp.float32) + b4_ref[...])

    out_ref[...] = h.astype(out_ref.dtype)


# ----------------------------- parameter prep -------------------------------

def _round_up(v, m):
    return ((v + m - 1) // m) * m


def _block_diag(w, fold):
    """[in, out] -> block-diagonal [fold*in, fold*out] (fold copies of w)."""
    if fold == 1:
        return w
    fin, fout = w.shape
    eye = jnp.eye(fold, dtype=w.dtype)
    big = eye[:, None, :, None] * w[None, :, None, :]
    return big.reshape(fold * fin, fold * fout)


def _tile_bias(b, fold):
    b = b.reshape(1, -1)
    return jnp.tile(b, (1, fold)) if fold > 1 else b


def _compute_fold(input_dim, max_folded_dim=2048):
    """fold s.t. fold*input_dim is a multiple of 128 (lane-dense I/O)."""
    g = math.gcd(input_dim, 128)
    fold = 128 // g
    if fold * input_dim > max_folded_dim:
        # TODO(synk): for very large, non-128-aligned input_dim, fall back to
        # unfolded (masked-lane) I/O instead of huge block-diagonal weights.
        fold = 1
    return fold


def prepare_params(params):
    """Precompute (once per params) the block-diagonal weights / tiled biases."""
    input_dim = params["w1"].shape[0]
    encoding_dim = params["w2"].shape[1]
    fold = _compute_fold(input_dim)
    expanded = []
    for i in range(1, 5):
        expanded.append(_block_diag(params[f"w{i}"], fold))
        expanded.append(_tile_bias(params[f"b{i}"], fold))
    return {
        "fold": fold,
        "input_dim": input_dim,
        "encoding_dim": encoding_dim,
        "expanded": tuple(expanded),
        "raw": params,
    }


# ------------------------------- forward ------------------------------------

def _pallas_main(xf, expanded, fold, input_dim, encoding_dim, block_rows):
    """Run the kernel over the folded view xf: [rows, fold*input_dim]."""
    rows, d0 = xf.shape
    d1 = fold * 4
    d2 = fold * encoding_dim
    d3 = fold * 4
    d4 = d0
    itemsize = xf.dtype.itemsize

    # Tile sizing: target ~2 MiB input tiles, keep tb a multiple of 8, and
    # keep >=4 grid steps (>=2 per TensorCore on dual-TC chips) when possible.
    target_rows = max(8, (((2 << 20) // max(d0 * itemsize, 1)) // 8) * 8)
    tb = min(block_rows, target_rows, _round_up(pl.cdiv(rows, 4), 8))
    tb = max(8, (tb // 8) * 8)
    grid = (pl.cdiv(rows, tb),)  # last block may be partial -> edge-masked

    weight_ops = expanded
    x_spec = pl.BlockSpec((tb, d0), lambda i: (i, 0))
    out_spec = pl.BlockSpec((tb, d4), lambda i: (i, 0))
    # full-array resident specs for the (tiny) weights / biases
    weight_specs = [pl.BlockSpec(a.shape, lambda i: (0, 0)) for a in weight_ops]

    weight_bytes = sum(int(a.size) * a.dtype.itemsize for a in weight_ops)

    # Generation-aware VMEM cap with ~25% headroom (v7x: 64 MiB, v5e/v6e: 128 MiB).
    try:
        info = pltpu.get_tpu_info()
        vmem_cap = int(getattr(info, "vmem_capacity_bytes", 64 << 20))
    except Exception:
        vmem_cap = 64 << 20
    vmem_limit = max(32 << 20, (vmem_cap * 3) // 4)

    flops = 2 * rows * (d0 * d1 + d1 * d2 + d2 * d3 + d3 * d4)
    bytes_accessed = rows * (d0 + d4) * itemsize + weight_bytes

    return pl.pallas_call(
        autoencoder_kernel,
        out_shape=jax.ShapeDtypeStruct((rows, d4), xf.dtype),
        grid=grid,
        in_specs=[x_spec] + weight_specs,
        out_specs=out_spec,
        compiler_params=pltpu.CompilerParams(
            dimension_semantics=("parallel",),
            vmem_limit_bytes=int(vmem_limit)),
        cost_estimate=pl.CostEstimate(
            flops=int(flops), transcendentals=0,
            bytes_accessed=int(bytes_accessed)),
    )(xf, *weight_ops)


def autoencoder_forward(x, prep, *, block_rows=4096):
    """x: [B, input_dim]. prep: output of prepare_params(params)."""
    fold = prep["fold"]
    input_dim = prep["input_dim"]
    B = x.shape[0]
    assert x.shape[1] == input_dim

    d0 = fold * input_dim
    rows_full = B // fold            # complete folded rows (no padding needed)
    main_count = rows_full * fold
    n_tail = B - main_count          # < fold leftover samples

    outs = []
    if rows_full > 0:
        x_main = x if main_count == B else x[:main_count]
        xf = x_main.reshape(rows_full, d0)          # free view for contiguous x
        main_out = _pallas_main(xf, prep["expanded"], fold, input_dim,
                                prep["encoding_dim"], block_rows)
        outs.append(main_out.reshape(main_count, input_dim))
    if n_tail > 0:
        # Tiny (< fold samples) tail handled in plain JAX -- avoids padding /
        # slicing the whole batch around the HBM-bound kernel.
        outs.append(reference_forward(x[main_count:], prep["raw"]).astype(x.dtype))

    return outs[0] if len(outs) == 1 else jnp.concatenate(outs, axis=0)


# ------------------------- init / reference / test --------------------------

def init_params(key, input_dim, encoding_dim):
    """PyTorch-style uniform(-1/sqrt(fan_in), 1/sqrt(fan_in)) init.
    Weights stored as [in_features, out_features]; biases as [1, out_features]."""
    dims = [(input_dim, 4), (4, encoding_dim), (encoding_dim, 4), (4, input_dim)]
    params = {}
    keys = jax.random.split(key, 2 * len(dims))
    for idx, (fan_in, fan_out) in enumerate(dims):
        bound = 1.0 / jnp.sqrt(jnp.float32(fan_in))
        w = jax.random.uniform(keys[2 * idx], (fan_in, fan_out),
                               minval=-bound, maxval=bound, dtype=jnp.float32)
        b = jax.random.uniform(keys[2 * idx + 1], (1, fan_out),
                               minval=-bound, maxval=bound, dtype=jnp.float32)
        params[f"w{idx + 1}"] = w
        params[f"b{idx + 1}"] = b
    return params


def reference_forward(x, params):
    h = x
    for i in range(1, 5):
        h = h @ params[f"w{i}"] + params[f"b{i}"]
        h = jnp.where(h >= 0, h, 0.01 * h)
    return h


if __name__ == "__main__":
    key = jax.random.PRNGKey(0)
    k_p, k_x, k_x2, k_p3, k_x3 = jax.random.split(key, 5)

    input_dim, encoding_dim = 16, 3
    params = init_params(k_p, input_dim, encoding_dim)
    prep = prepare_params(params)

    # Small batch: single (partial) block, whole batch goes through the kernel.
    B = 8
    x = jax.random.normal(k_x, (B, input_dim), dtype=jnp.float32)
    out = jax.block_until_ready(autoencoder_forward(x, prep))
    ref = reference_forward(x, params)
    assert out.shape == (B, input_dim)
    assert jnp.allclose(out, ref, atol=1e-5, rtol=1e-5), "mismatch vs reference (small)"

    # Larger ragged batch: multi-step grid, edge-masked last block, JAX tail
    # (no whole-batch pad or slice copies).
    B2 = 8187
    x2 = jax.random.normal(k_x2, (B2, input_dim), dtype=jnp.float32)
    out2 = jax.block_until_ready(autoencoder_forward(x2, prep))
    ref2 = reference_forward(x2, params)
    assert out2.shape == (B2, input_dim)
    assert jnp.allclose(out2, ref2, atol=1e-4, rtol=1e-4), "mismatch vs reference (large)"

    # input_dim that does NOT divide 128 (24 -> fold=16, d0=384) + ragged tail,
    # exercising the generalized lane folding.
    input_dim3, encoding_dim3 = 24, 5
    params3 = init_params(k_p3, input_dim3, encoding_dim3)
    prep3 = prepare_params(params3)
    B3 = 37
    x3 = jax.random.normal(k_x3, (B3, input_dim3), dtype=jnp.float32)
    out3 = jax.block_until_ready(autoencoder_forward(x3, prep3))
    ref3 = reference_forward(x3, params3)
    assert out3.shape == (B3, input_dim3)
    assert jnp.allclose(out3, ref3, atol=1e-4, rtol=1e-4), "mismatch vs reference (fold=16)"

    print("KERNEL_OK")
</pallas_src>

<mosaic_0001>
module attributes {stable_mosaic.version = 11 : i64} {
  func.func @autoencoder_kernel(%arg0: i32, %arg1: memref<8x128xf32, #tpu.memory_space<vmem>>, %arg2: memref<128x32xf32, #tpu.memory_space<vmem>>, %arg3: memref<1x32xf32, #tpu.memory_space<vmem>>, %arg4: memref<32x24xf32, #tpu.memory_space<vmem>>, %arg5: memref<1x24xf32, #tpu.memory_space<vmem>>, %arg6: memref<24x32xf32, #tpu.memory_space<vmem>>, %arg7: memref<1x32xf32, #tpu.memory_space<vmem>>, %arg8: memref<32x128xf32, #tpu.memory_space<vmem>>, %arg9: memref<1x128xf32, #tpu.memory_space<vmem>>, %arg10: memref<8x128xf32, #tpu.memory_space<vmem>>) attributes {dimension_semantics = [#tpu.dimension_semantics<parallel>], iteration_bounds = array<i64: 1>, scalar_prefetch = 0 : i64, scratch_operands = 0 : i64, tpu.core_type = #tpu.core_type<tc>, window_params = [{transform_indices = @transform_0, window_bounds = array<i64: 8, 128>}, {pipeline_mode = #tpu.pipeline_mode<synchronous>, transform_indices = @transform_1, window_bounds = array<i64: 128, 32>}, {pipeline_mode = #tpu.pipeline_mode<synchronous>, transform_indices = @transform_2, window_bounds = array<i64: 1, 32>}, {pipeline_mode = #tpu.pipeline_mode<synchronous>, transform_indices = @transform_3, window_bounds = array<i64: 32, 24>}, {pipeline_mode = #tpu.pipeline_mode<synchronous>, transform_indices = @transform_4, window_bounds = array<i64: 1, 24>}, {pipeline_mode = #tpu.pipeline_mode<synchronous>, transform_indices = @transform_5, window_bounds = array<i64: 24, 32>}, {pipeline_mode = #tpu.pipeline_mode<synchronous>, transform_indices = @transform_6, window_bounds = array<i64: 1, 32>}, {pipeline_mode = #tpu.pipeline_mode<synchronous>, transform_indices = @transform_7, window_bounds = array<i64: 32, 128>}, {pipeline_mode = #tpu.pipeline_mode<synchronous>, transform_indices = @transform_8, window_bounds = array<i64: 1, 128>}, {transform_indices = @transform_9, window_bounds = array<i64: 8, 128>}]} {
    %c0 = arith.constant 0 : index
    %c0_0 = arith.constant 0 : index
    %0 = vector.load %arg1[%c0, %c0_0] : memref<8x128xf32, #tpu.memory_space<vmem>>, vector<8x128xf32>
    %c0_1 = arith.constant 0 : index
    %c0_2 = arith.constant 0 : index
    %1 = vector.load %arg2[%c0_1, %c0_2] : memref<128x32xf32, #tpu.memory_space<vmem>>, vector<128x32xf32>
    %cst = arith.constant dense<0.000000e+00> : vector<8x32xf32>
    %2 = tpu.matmul %0, %1, %cst {dimension_numbers = #tpu.dot_dimension_numbers<[1], [0], [0], [1], [0, 0, 1, 1], [], []>} : vector<8x128xf32>, vector<128x32xf32>, vector<8x32xf32> -> vector<8x32xf32>
    %c0_3 = arith.constant 0 : index
    %c0_4 = arith.constant 0 : index
    %3 = vector.load %arg3[%c0_3, %c0_4] : memref<1x32xf32, #tpu.memory_space<vmem>>, vector<1x32xf32>
    %4 = vector.broadcast %3 : vector<1x32xf32> to vector<8x32xf32>
    %5 = arith.addf %2, %4 : vector<8x32xf32>
    %cst_5 = arith.constant 0.000000e+00 : f32
    %6 = vector.broadcast %cst_5 : f32 to vector<8x32xf32>
    %7 = arith.cmpf oge, %5, %6 : vector<8x32xf32>
    %cst_6 = arith.constant 0.00999999977 : f32
    %8 = vector.broadcast %cst_6 : f32 to vector<8x32xf32>
    %9 = arith.mulf %8, %5 : vector<8x32xf32>
    %10 = arith.select %7, %5, %9 : vector<8x32xi1>, vector<8x32xf32>
    %c0_7 = arith.constant 0 : index
    %c0_8 = arith.constant 0 : index
    %11 = vector.load %arg4[%c0_7, %c0_8] : memref<32x24xf32, #tpu.memory_space<vmem>>, vector<32x24xf32>
    %cst_9 = arith.constant dense<0.000000e+00> : vector<8x24xf32>
    %12 = tpu.matmul %10, %11, %cst_9 {dimension_numbers = #tpu.dot_dimension_numbers<[1], [0], [0], [1], [0, 0, 1, 1], [], []>} : vector<8x32xf32>, vector<32x24xf32>, vector<8x24xf32> -> vector<8x24xf32>
    %c0_10 = arith.constant 0 : index
    %c0_11 = arith.constant 0 : index
    %13 = vector.load %arg5[%c0_10, %c0_11] : memref<1x24xf32, #tpu.memory_space<vmem>>, vector<1x24xf32>
    %14 = vector.broadcast %13 : vector<1x24xf32> to vector<8x24xf32>
    %15 = arith.addf %12, %14 : vector<8x24xf32>
    %cst_12 = arith.constant 0.000000e+00 : f32
    %16 = vector.broadcast %cst_12 : f32 to vector<8x24xf32>
    %17 = arith.cmpf oge, %15, %16 : vector<8x24xf32>
    %cst_13 = arith.constant 0.00999999977 : f32
    %18 = vector.broadcast %cst_13 : f32 to vector<8x24xf32>
    %19 = arith.mulf %18, %15 : vector<8x24xf32>
    %20 = arith.select %17, %15, %19 : vector<8x24xi1>, vector<8x24xf32>
    %c0_14 = arith.constant 0 : index
    %c0_15 = arith.constant 0 : index
    %21 = vector.load %arg6[%c0_14, %c0_15] : memref<24x32xf32, #tpu.memory_space<vmem>>, vector<24x32xf32>
    %cst_16 = arith.constant dense<0.000000e+00> : vector<8x32xf32>
    %22 = tpu.matmul %20, %21, %cst_16 {dimension_numbers = #tpu.dot_dimension_numbers<[1], [0], [0], [1], [0, 0, 1, 1], [], []>} : vector<8x24xf32>, vector<24x32xf32>, vector<8x32xf32> -> vector<8x32xf32>
    %c0_17 = arith.constant 0 : index
    %c0_18 = arith.constant 0 : index
    %23 = vector.load %arg7[%c0_17, %c0_18] : memref<1x32xf32, #tpu.memory_space<vmem>>, vector<1x32xf32>
    %24 = vector.broadcast %23 : vector<1x32xf32> to vector<8x32xf32>
    %25 = arith.addf %22, %24 : vector<8x32xf32>
    %cst_19 = arith.constant 0.000000e+00 : f32
    %26 = vector.broadcast %cst_19 : f32 to vector<8x32xf32>
    %27 = arith.cmpf oge, %25, %26 : vector<8x32xf32>
    %cst_20 = arith.constant 0.00999999977 : f32
    %28 = vector.broadcast %cst_20 : f32 to vector<8x32xf32>
    %29 = arith.mulf %28, %25 : vector<8x32xf32>
    %30 = arith.select %27, %25, %29 : vector<8x32xi1>, vector<8x32xf32>
    %c0_21 = arith.constant 0 : index
    %c0_22 = arith.constant 0 : index
    %31 = vector.load %arg8[%c0_21, %c0_22] : memref<32x128xf32, #tpu.memory_space<vmem>>, vector<32x128xf32>
    %cst_23 = arith.constant dense<0.000000e+00> : vector<8x128xf32>
    %32 = tpu.matmul %30, %31, %cst_23 {dimension_numbers = #tpu.dot_dimension_numbers<[1], [0], [0], [1], [0, 0, 1, 1], [], []>} : vector<8x32xf32>, vector<32x128xf32>, vector<8x128xf32> -> vector<8x128xf32>
    %c0_24 = arith.constant 0 : index
    %c0_25 = arith.constant 0 : index
    %33 = vector.load %arg9[%c0_24, %c0_25] : memref<1x128xf32, #tpu.memory_space<vmem>>, vector<1x128xf32>
    %34 = vector.broadcast %33 : vector<1x128xf32> to vector<8x128xf32>
    %35 = arith.addf %32, %34 : vector<8x128xf32>
    %cst_26 = arith.constant 0.000000e+00 : f32
    %36 = vector.broadcast %cst_26 : f32 to vector<8x128xf32>
    %37 = arith.cmpf oge, %35, %36 : vector<8x128xf32>
    %cst_27 = arith.constant 0.00999999977 : f32
    %38 = vector.broadcast %cst_27 : f32 to vector<8x128xf32>
    %39 = arith.mulf %38, %35 : vector<8x128xf32>
    %40 = arith.select %37, %35, %39 : vector<8x128xi1>, vector<8x128xf32>
    %c0_28 = arith.constant 0 : index
    %c0_29 = arith.constant 0 : index
    %41 = vector.load %arg10[%c0_28, %c0_29] : memref<8x128xf32, #tpu.memory_space<vmem>>, vector<8x128xf32>
    tpu.vector_store %arg10[%c0_28, %c0_29], %40 {strides = array<i32>} : memref<8x128xf32, #tpu.memory_space<vmem>>, vector<8x128xf32>,
    return
  }
  func.func @transform_0(%arg0: i32) -> (i32, i32) {
    %c0_i32 = arith.constant 0 : i32
    %c0_i32_0 = arith.constant 0 : i32
    return %arg0, %c0_i32 : i32, i32
  }
  func.func @transform_1(%arg0: i32) -> (i32, i32) {
    %c0_i32 = arith.constant 0 : i32
    %c0_i32_0 = arith.constant 0 : i32
    %c0_i32_1 = arith.constant 0 : i32
    return %c0_i32, %c0_i32_0 : i32, i32
  }
  func.func @transform_2(%arg0: i32) -> (i32, i32) {
    %c0_i32 = arith.constant 0 : i32
    %c0_i32_0 = arith.constant 0 : i32
    %c0_i32_1 = arith.constant 0 : i32
    return %c0_i32, %c0_i32_0 : i32, i32
  }
  func.func @transform_3(%arg0: i32) -> (i32, i32) {
    %c0_i32 = arith.constant 0 : i32
    %c0_i32_0 = arith.constant 0 : i32
    %c0_i32_1 = arith.constant 0 : i32
    return %c0_i32, %c0_i32_0 : i32, i32
  }
  func.func @transform_4(%arg0: i32) -> (i32, i32) {
    %c0_i32 = arith.constant 0 : i32
    %c0_i32_0 = arith.constant 0 : i32
    %c0_i32_1 = arith.constant 0 : i32
    return %c0_i32, %c0_i32_0 : i32, i32
  }
  func.func @transform_5(%arg0: i32) -> (i32, i32) {
    %c0_i32 = arith.constant 0 : i32
    %c0_i32_0 = arith.constant 0 : i32
    %c0_i32_1 = arith.constant 0 : i32
    return %c0_i32, %c0_i32_0 : i32, i32
  }
  func.func @transform_6(%arg0: i32) -> (i32, i32) {
    %c0_i32 = arith.constant 0 : i32
    %c0_i32_0 = arith.constant 0 : i32
    %c0_i32_1 = arith.constant 0 : i32
    return %c0_i32, %c0_i32_0 : i32, i32
  }
  func.func @transform_7(%arg0: i32) -> (i32, i32) {
    %c0_i32 = arith.constant 0 : i32
    %c0_i32_0 = arith.constant 0 : i32
    %c0_i32_1 = arith.constant 0 : i32
    return %c0_i32, %c0_i32_0 : i32, i32
  }
  func.func @transform_8(%arg0: i32) -> (i32, i32) {
    %c0_i32 = arith.constant 0 : i32
    %c0_i32_0 = arith.constant 0 : i32
    %c0_i32_1 = arith.constant 0 : i32
    return %c0_i32, %c0_i32_0 : i32, i32
  }
  func.func @transform_9(%arg0: i32) -> (i32, i32) {
    %c0_i32 = arith.constant 0 : i32
    %c0_i32_0 = arith.constant 0 : i32
    return %arg0, %c0_i32 : i32, i32
  }
}

</mosaic_0001>

<llo_original>
// kernel: tpu_custom_call.1
$region0: #{tpu_custom_call.1}
  #allocation0 [shape = 'u32[]', space=smem, size = 0x4, offset = 0x4, fixed_abs, tag = 'smem constant byte address 0x4 - core index']
  #allocation1 [shape = 'u32[144,128]{1,0:T(1,128)}', space=vmem, size = 0x12000, scoped, tag = 'internal scratch']
  %s0 = inlined_call_operand.vmem [shape: f32[1,128], index: 0, kind: input, shape index: {}]
  %s1 = inlined_call_operand.vmem [shape: f32[128,32], index: 1, kind: input, shape index: {}]
  %s2 = inlined_call_operand.vmem [shape: f32[1,32], index: 2, kind: input, shape index: {}]
  %s3 = inlined_call_operand.vmem [shape: f32[32,24], index: 3, kind: input, shape index: {}]
  %s4 = inlined_call_operand.vmem [shape: f32[1,24], index: 4, kind: input, shape index: {}]
  %s5 = inlined_call_operand.vmem [shape: f32[24,32], index: 5, kind: input, shape index: {}]
  %s6 = inlined_call_operand.vmem [shape: f32[1,32], index: 6, kind: input, shape index: {}]
  %s7 = inlined_call_operand.vmem [shape: f32[32,128], index: 7, kind: input, shape index: {}]
  %s8 = inlined_call_operand.vmem [shape: f32[1,128], index: 8, kind: input, shape index: {}]
  %s9 = inlined_call_operand.hbm [shape: f32[1,128], index: 9, kind: output, shape index: {}]
  %s10 = sld [smem:[#allocation0]]
  $region46: #{tpu_custom_call.1} parent=0
    _
  %s12 = ssub.s32 1, %s10
  %s13 = scalar_select 0, %s12, %s10
  $region1: #{tpu_custom_call.1} parent=0
    #allocation2 [shape = 'u8[4096]{0}', space=vmem, size = 0x1000, scoped, tag = 'output window, operand 0, single buffered']
    #allocation3 [shape = 's32[1]{0}', space=sflag, size = 0x4, scoped, tag = 'scoped memory for tpu_custom_call.1']
    %14 = vsyncpa [#allocation3], 0
    // Predicated region
    $region2: #{tpu_custom_call.1} parent=1 // pred_check
      _
    $region3: #{tpu_custom_call.1} parent=1 // pred_check_branch
      %16 = sbr.rel (0) target = $region5
    $region4: #{tpu_custom_call.1} parent=1 // pred_region
      _
    $region5: #{tpu_custom_call.1} parent=1 // pred_fallthru
      _
    // Predicated region
    $region6: #{tpu_custom_call.1} parent=1 // pred_check
      _
    $region7: #{tpu_custom_call.1} parent=1 // pred_check_branch
      %18 = sbr.rel (0) target = $region9
    $region8: #{tpu_custom_call.1} parent=1 // pred_region
      _
    $region9: #{tpu_custom_call.1} parent=1 // pred_fallthru
      _
    // Predicated region
    $region10: #{tpu_custom_call.1} parent=1 // pred_check
      _
    $region11: #{tpu_custom_call.1} parent=1 // pred_check_branch
      %20 = sbr.rel (0) target = $region13
    $region12: #{tpu_custom_call.1} parent=1 // pred_region
      _
    $region13: #{tpu_custom_call.1} parent=1 // pred_fallthru
      _
    // Predicated region
    $region14: #{tpu_custom_call.1} parent=1 // pred_check
      _
    $region15: #{tpu_custom_call.1} parent=1 // pred_check_branch
      %22 = sbr.rel (0) target = $region17
    $region16: #{tpu_custom_call.1} parent=1 // pred_region
      _
    $region17: #{tpu_custom_call.1} parent=1 // pred_fallthru
      _
    // Predicated region
    $region18: #{tpu_custom_call.1} parent=1 // pred_check
      _
    $region19: #{tpu_custom_call.1} parent=1 // pred_check_branch
      %24 = sbr.rel (0) target = $region21
    $region20: #{tpu_custom_call.1} parent=1 // pred_region
      _
    $region21: #{tpu_custom_call.1} parent=1 // pred_fallthru
      _
    // Predicated region
    $region22: #{tpu_custom_call.1} parent=1 // pred_check
      _
    $region23: #{tpu_custom_call.1} parent=1 // pred_check_branch
      %26 = sbr.rel (0) target = $region25
    $region24: #{tpu_custom_call.1} parent=1 // pred_region
      _
    $region25: #{tpu_custom_call.1} parent=1 // pred_fallthru
      _
    // Predicated region
    $region26: #{tpu_custom_call.1} parent=1 // pred_check
      _
    $region27: #{tpu_custom_call.1} parent=1 // pred_check_branch
      %28 = sbr.rel (0) target = $region29
    $region28: #{tpu_custom_call.1} parent=1 // pred_region
      _
    $region29: #{tpu_custom_call.1} parent=1 // pred_fallthru
      _
    // Predicated region
    $region30: #{tpu_custom_call.1} parent=1 // pred_check
      _
    $region31: #{tpu_custom_call.1} parent=1 // pred_check_branch
      %30 = sbr.rel (0) target = $region33
    $region32: #{tpu_custom_call.1} parent=1 // pred_region
      _
    $region33: #{tpu_custom_call.1} parent=1 // pred_fallthru
      _
    // Predicated region
    $region34: #{tpu_custom_call.1} parent=1 // pred_check
      _
    $region35: #{tpu_custom_call.1} parent=1 // pred_check_branch
      %32 = sbr.rel (0) target = $region37
    $region36: #{tpu_custom_call.1} parent=1 // pred_region
      _
    $region37: #{tpu_custom_call.1} parent=1 // pred_fallthru
      _
    %v33 = vld [vmem:[%s0] sm:$0xff]
    %v34 = vld [vmem:[%s1] sm:$0xff]
    %v35 = vld [vmem:[%s1 + $0x8] sm:$0xff]
    %v36 = vld [vmem:[%s1 + $0x10] sm:$0xff]
    %v37 = vld [vmem:[%s1 + $0x18] sm:$0xff]
    %v38 = vld [vmem:[%s1 + $0x20] sm:$0xff]
    %v39 = vld [vmem:[%s1 + $0x28] sm:$0xff]
    %v40 = vld [vmem:[%s1 + $0x30] sm:$0xff]
    %v41 = vld [vmem:[%s1 + $0x38] sm:$0xff]
    %v42 = vld [vmem:[%s1 + $0x40] sm:$0xff]
    %v43 = vld [vmem:[%s1 + $0x48] sm:$0xff]
    %v44 = vld [vmem:[%s1 + $0x50] sm:$0xff]
    %v45 = vld [vmem:[%s1 + $0x58] sm:$0xff]
    %v46 = vld [vmem:[%s1 + $0x60] sm:$0xff]
    %v47 = vld [vmem:[%s1 + $0x68] sm:$0xff]
    %v48 = vld [vmem:[%s1 + $0x70] sm:$0xff]
    %v49 = vld [vmem:[%s1 + $0x78] sm:$0xff]
    %v50 = vld [vmem:[%s2] sm:$0x1]
    %v52 = vlaneseq
    %v53 = vshrl.u32 %v52, 7
    %v54 = vsub.s32 0, %v53
    %v55 = vrot.slane %v50, %v54
    %57 = vmatprep.subr.mxu0 0.0
    %58 = vmatpush1.msra.mxu0 %v49
    %59 = vmatprep.subr.mxu0 0.0
    %60 = vmatpush1.msra.mxu0 %v48
    %61 = vmatprep.subr.mxu0 0.0
    %62 = vmatpush1.msra.mxu0 %v47
    %63 = vmatprep.subr.mxu0 0.0
    %64 = vmatpush1.msra.mxu0 %v46
    %65 = vmatprep.subr.mxu0 0.0
    %66 = vmatpush1.msra.mxu0 %v45
    %67 = vmatprep.subr.mxu0 0.0
    %68 = vmatpush1.msra.mxu0 %v44
    %69 = vmatprep.subr.mxu0 0.0
    %70 = vmatpush1.msra.mxu0 %v43
    %71 = vmatprep.subr.mxu0 0.0
    %72 = vmatpush1.msra.mxu0 %v42
    %73 = vmatprep.subr.mxu0 0.0
    %74 = vmatpush1.msra.mxu0 %v41
    %75 = vmatprep.subr.mxu0 0.0
    %76 = vmatpush1.msra.mxu0 %v40
    %77 = vmatprep.subr.mxu0 0.0
    %78 = vmatpush1.msra.mxu0 %v39
    %79 = vmatprep.subr.mxu0 0.0
    %80 = vmatpush1.msra.mxu0 %v38
    %81 = vmatprep.subr.mxu0 0.0
    %82 = vmatpush1.msra.mxu0 %v37
    %83 = vmatprep.subr.mxu0 0.0
    %84 = vmatpush1.msra.mxu0 %v36
    %85 = vmatprep.subr.mxu0 0.0
    %86 = vmatpush1.msra.mxu0 %v35
    %87 = vmatprep.subr.mxu0 0.0
    %88 = vmatpush1.msra.mxu0 %v34
    %89 = vmatprep.subr.mxu0 0.0
    %90 = vmatpush2.msra.mxu0 0.0
    %91 = vmatprep.subr.mxu0 0.0
    %92 = vmatpush2.msra.mxu0 0.0
    %93 = vmatprep.subr.mxu0 0.0
    %94 = vmatpush2.msra.mxu0 0.0
    %95 = vmatprep.subr.mxu0 0.0
    %96 = vmatpush2.msra.mxu0 0.0
    %97 = vmatprep.subr.mxu0 0.0
    %98 = vmatpush2.msra.mxu0 0.0
    %99 = vmatprep.subr.mxu0 0.0
    %100 = vmatpush2.msra.mxu0 0.0
    %101 = vmatprep.subr.mxu0 0.0
    %102 = vmatpush2.msra.mxu0 0.0
    %103 = vmatprep.subr.mxu0 0.0
    %104 = vmatpush2.msra.mxu0 0.0
    %105 = vmatprep.subr.mxu0 0.0
    %106 = vmatpush2.msra.mxu0 0.0
    %107 = vmatprep.subr.mxu0 0.0
    %108 = vmatpush2.msra.mxu0 0.0
    %109 = vmatprep.subr.mxu0 0.0
    %110 = vmatpush2.msra.mxu0 0.0
    %111 = vmatprep.subr.mxu0 0.0
    %112 = vmatpush2.msra.mxu0 0.0
    %113 = vmatprep.subr.mxu0 0.0
    %114 = vmatpush2.msra.mxu0 0.0
    %115 = vmatprep.subr.mxu0 0.0
    %116 = vmatpush2.msra.mxu0 0.0
    %117 = vmatprep.subr.mxu0 0.0
    %118 = vmatpush2.msra.mxu0 0.0
    %119 = vmatprep.subr.mxu0 0.0
    %120 = vmatpush2.msra.mxu0 0.0
    %121 = vmatprep.mubr.f32.mxu0 0.0
    %122 = vmatmul.mubr.f32.gmra.mxu0 %v33
    %v123 = vpop.f32.mrf.mxu0
    %v124 = vadd.f32 %v55, %v123
    %v125 = vpop.f32.mrf.mxu0
    %126 = vdwg.mxu0
    %vm127 = vcmp.ge.f32.partialorder %v124, 0.0
    %v128 = vmul.f32 %v124, 0.01
    %v129 = vsel %vm127, %v124, %v128
    %v130 = vld [vmem:[%s3] sm:$0xff]
    %v131 = vld [vmem:[%s3 + $0x8] sm:$0xff]
    %v132 = vld [vmem:[%s3 + $0x10] sm:$0xff]
    %v133 = vld [vmem:[%s3 + $0x18] sm:$0xff]
    %v134 = vld [vmem:[%s4] sm:$0x1]
    %v136 = vlaneseq
    %v137 = vshrl.u32 %v136, 7
    %v138 = vsub.s32 0, %v137
    %v139 = vrot.slane %v134, %v138
    %vm141 = vcmask 261120
    %v143 = vsel %vm141, %v129, 0
    %145 = vmatprep.subr.mxu0 0.0
    %146 = vmatpush1.msra.mxu0 0.0
    %147 = vmatprep.subr.mxu0 0.0
    %148 = vmatpush1.msra.mxu0 0.0
    %149 = vmatprep.subr.mxu0 0.0
    %150 = vmatpush1.msra.mxu0 0.0
    %151 = vmatprep.subr.mxu0 0.0
    %152 = vmatpush1.msra.mxu0 0.0
    %153 = vmatprep.subr.mxu0 0.0
    %154 = vmatpush1.msra.mxu0 0.0
    %155 = vmatprep.subr.mxu0 0.0
    %156 = vmatpush1.msra.mxu0 0.0
    %157 = vmatprep.subr.mxu0 0.0
    %158 = vmatpush1.msra.mxu0 0.0
    %159 = vmatprep.subr.mxu0 0.0
    %160 = vmatpush1.msra.mxu0 0.0
    %161 = vmatprep.subr.mxu0 0.0
    %162 = vmatpush1.msra.mxu0 0.0
    %163 = vmatprep.subr.mxu0 0.0
    %164 = vmatpush1.msra.mxu0 0.0
    %165 = vmatprep.subr.mxu0 0.0
    %166 = vmatpush1.msra.mxu0 0.0
    %167 = vmatprep.subr.mxu0 0.0
    %168 = vmatpush1.msra.mxu0 0.0
    %169 = vmatprep.subr.mxu0 0.0
    %170 = vmatpush1.msra.mxu0 %v133
    %171 = vmatprep.subr.mxu0 0.0
    %172 = vmatpush1.msra.mxu0 %v132
    %173 = vmatprep.subr.mxu0 0.0
    %174 = vmatpush1.msra.mxu0 %v131
    %175 = vmatprep.subr.mxu0 0.0
    %176 = vmatpush1.msra.mxu0 %v130
    %177 = vmatprep.subr.mxu0 0.0
    %178 = vmatpush2.msra.mxu0 0.0
    %179 = vmatprep.subr.mxu0 0.0
    %180 = vmatpush2.msra.mxu0 0.0
    %181 = vmatprep.subr.mxu0 0.0
    %182 = vmatpush2.msra.mxu0 0.0
    %183 = vmatprep.subr.mxu0 0.0
    %184 = vmatpush2.msra.mxu0 0.0
    %185 = vmatprep.subr.mxu0 0.0
    %186 = vmatpush2.msra.mxu0 0.0
    %187 = vmatprep.subr.mxu0 0.0
    %188 = vmatpush2.msra.mxu0 0.0
    %189 = vmatprep.subr.mxu0 0.0
    %190 = vmatpush2.msra.mxu0 0.0
    %191 = vmatprep.subr.mxu0 0.0
    %192 = vmatpush2.msra.mxu0 0.0
    %193 = vmatprep.subr.mxu0 0.0
    %194 = vmatpush2.msra.mxu0 0.0
    %195 = vmatprep.subr.mxu0 0.0
    %196 = vmatpush2.msra.mxu0 0.0
    %197 = vmatprep.subr.mxu0 0.0
    %198 = vmatpush2.msra.mxu0 0.0
    %199 = vmatprep.subr.mxu0 0.0
    %200 = vmatpush2.msra.mxu0 0.0
    %201 = vmatprep.subr.mxu0 0.0
    %202 = vmatpush2.msra.mxu0 0.0
    %203 = vmatprep.subr.mxu0 0.0
    %204 = vmatpush2.msra.mxu0 0.0
    %205 = vmatprep.subr.mxu0 0.0
    %206 = vmatpush2.msra.mxu0 0.0
    %207 = vmatprep.subr.mxu0 0.0
    %208 = vmatpush2.msra.mxu0 0.0
    %209 = vmatprep.mubr.f32.mxu0 0.0
    %210 = vmatmul.mubr.f32.gmra.mxu0 %v143
    %v211 = vpop.f32.mrf.mxu0
    %v212 = vadd.f32 %v139, %v211
    %v213 = vpop.f32.mrf.mxu0
    %214 = vdwg.mxu0
    %vm215 = vcmp.ge.f32.partialorder %v212, 0.0
    %v216 = vmul.f32 %v212, 0.01
    %v217 = vsel %vm215, %v212, %v216
    %v218 = vld [vmem:[%s5] sm:$0xff]
    %v219 = vld [vmem:[%s5 + $0x8] sm:$0xff]
    %v220 = vld [vmem:[%s5 + $0x10] sm:$0xff]
    %v221 = vld [vmem:[%s6] sm:$0x1]
    %v223 = vlaneseq
    %v224 = vshrl.u32 %v223, 7
    %v225 = vsub.s32 0, %v224
    %v226 = vrot.slane %v221, %v225
    %vm228 = vcmask 195584
    %v230 = vsel %vm228, %v217, 0
    %232 = vmatprep.subr.mxu0 0.0
    %233 = vmatpush1.msra.mxu0 0.0
    %234 = vmatprep.subr.mxu0 0.0
    %235 = vmatpush1.msra.mxu0 0.0
    %236 = vmatprep.subr.mxu0 0.0
    %237 = vmatpush1.msra.mxu0 0.0
    %238 = vmatprep.subr.mxu0 0.0
    %239 = vmatpush1.msra.mxu0 0.0
    %240 = vmatprep.subr.mxu0 0.0
    %241 = vmatpush1.msra.mxu0 0.0
    %242 = vmatprep.subr.mxu0 0.0
    %243 = vmatpush1.msra.mxu0 0.0
    %244 = vmatprep.subr.mxu0 0.0
    %245 = vmatpush1.msra.mxu0 0.0
    %246 = vmatprep.subr.mxu0 0.0
    %247 = vmatpush1.msra.mxu0 0.0
    %248 = vmatprep.subr.mxu0 0.0
    %249 = vmatpush1.msra.mxu0 0.0
    %250 = vmatprep.subr.mxu0 0.0
    %251 = vmatpush1.msra.mxu0 0.0
    %252 = vmatprep.subr.mxu0 0.0
    %253 = vmatpush1.msra.mxu0 0.0
    %254 = vmatprep.subr.mxu0 0.0
    %255 = vmatpush1.msra.mxu0 0.0
    %256 = vmatprep.subr.mxu0 0.0
    %257 = vmatpush1.msra.mxu0 0.0
    %258 = vmatprep.subr.mxu0 0.0
    %259 = vmatpush1.msra.mxu0 %v220
    %260 = vmatprep.subr.mxu0 0.0
    %261 = vmatpush1.msra.mxu0 %v219
    %262 = vmatprep.subr.mxu0 0.0
    %263 = vmatpush1.msra.mxu0 %v218
    %264 = vmatprep.subr.mxu0 0.0
    %265 = vmatpush2.msra.mxu0 0.0
    %266 = vmatprep.subr.mxu0 0.0
    %267 = vmatpush2.msra.mxu0 0.0
    %268 = vmatprep.subr.mxu0 0.0
    %269 = vmatpush2.msra.mxu0 0.0
    %270 = vmatprep.subr.mxu0 0.0
    %271 = vmatpush2.msra.mxu0 0.0
    %272 = vmatprep.subr.mxu0 0.0
    %273 = vmatpush2.msra.mxu0 0.0
    %274 = vmatprep.subr.mxu0 0.0
    %275 = vmatpush2.msra.mxu0 0.0
    %276 = vmatprep.subr.mxu0 0.0
    %277 = vmatpush2.msra.mxu0 0.0
    %278 = vmatprep.subr.mxu0 0.0
    %279 = vmatpush2.msra.mxu0 0.0
    %280 = vmatprep.subr.mxu0 0.0
    %281 = vmatpush2.msra.mxu0 0.0
    %282 = vmatprep.subr.mxu0 0.0
    %283 = vmatpush2.msra.mxu0 0.0
    %284 = vmatprep.subr.mxu0 0.0
    %285 = vmatpush2.msra.mxu0 0.0
    %286 = vmatprep.subr.mxu0 0.0
    %287 = vmatpush2.msra.mxu0 0.0
    %288 = vmatprep.subr.mxu0 0.0
    %289 = vmatpush2.msra.mxu0 0.0
    %290 = vmatprep.subr.mxu0 0.0
    %291 = vmatpush2.msra.mxu0 0.0
    %292 = vmatprep.subr.mxu0 0.0
    %293 = vmatpush2.msra.mxu0 0.0
    %294 = vmatprep.subr.mxu0 0.0
    %295 = vmatpush2.msra.mxu0 0.0
    %296 = vmatprep.mubr.f32.mxu0 0.0
    %297 = vmatmul.mubr.f32.gmra.mxu0 %v230
    %v298 = vpop.f32.mrf.mxu0
    %v299 = vadd.f32 %v226, %v298
    %v300 = vpop.f32.mrf.mxu0
    %301 = vdwg.mxu0
    %vm302 = vcmp.ge.f32.partialorder %v299, 0.0
    %v303 = vmul.f32 %v299, 0.01
    %v304 = vsel %vm302, %v299, %v303
    %v305 = vld [vmem:[%s7] sm:$0xff]
    %v306 = vld [vmem:[%s7 + $0x8] sm:$0xff]
    %v307 = vld [vmem:[%s7 + $0x10] sm:$0xff]
    %v308 = vld [vmem:[%s7 + $0x18] sm:$0xff]
    %v309 = vld [vmem:[%s8] sm:$0x1]
    %v311 = vlaneseq
    %v312 = vshrl.u32 %v311, 7
    %v313 = vsub.s32 0, %v312
    %v314 = vrot.slane %v309, %v313
    %v317 = vsel %vm141, %v304, 0
    %319 = vmatprep.subr.mxu0 0.0
    %320 = vmatpush1.msra.mxu0 0.0
    %321 = vmatprep.subr.mxu0 0.0
    %322 = vmatpush1.msra.mxu0 0.0
    %323 = vmatprep.subr.mxu0 0.0
    %324 = vmatpush1.msra.mxu0 0.0
    %325 = vmatprep.subr.mxu0 0.0
    %326 = vmatpush1.msra.mxu0 0.0
    %327 = vmatprep.subr.mxu0 0.0
    %328 = vmatpush1.msra.mxu0 0.0
    %329 = vmatprep.subr.mxu0 0.0
    %330 = vmatpush1.msra.mxu0 0.0
    %331 = vmatprep.subr.mxu0 0.0
    %332 = vmatpush1.msra.mxu0 0.0
    %333 = vmatprep.subr.mxu0 0.0
    %334 = vmatpush1.msra.mxu0 0.0
    %335 = vmatprep.subr.mxu0 0.0
    %336 = vmatpush1.msra.mxu0 0.0
    %337 = vmatprep.subr.mxu0 0.0
    %338 = vmatpush1.msra.mxu0 0.0
    %339 = vmatprep.subr.mxu0 0.0
    %340 = vmatpush1.msra.mxu0 0.0
    %341 = vmatprep.subr.mxu0 0.0
    %342 = vmatpush1.msra.mxu0 0.0
    %343 = vmatprep.subr.mxu0 0.0
    %344 = vmatpush1.msra.mxu0 %v308
    %345 = vmatprep.subr.mxu0 0.0
    %346 = vmatpush1.msra.mxu0 %v307
    %347 = vmatprep.subr.mxu0 0.0
    %348 = vmatpush1.msra.mxu0 %v306
    %349 = vmatprep.subr.mxu0 0.0
    %350 = vmatpush1.msra.mxu0 %v305
    %351 = vmatprep.subr.mxu0 0.0
    %352 = vmatpush2.msra.mxu0 0.0
    %353 = vmatprep.subr.mxu0 0.0
    %354 = vmatpush2.msra.mxu0 0.0
    %355 = vmatprep.subr.mxu0 0.0
    %356 = vmatpush2.msra.mxu0 0.0
    %357 = vmatprep.subr.mxu0 0.0
    %358 = vmatpush2.msra.mxu0 0.0
    %359 = vmatprep.subr.mxu0 0.0
    %360 = vmatpush2.msra.mxu0 0.0
    %361 = vmatprep.subr.mxu0 0.0
    %362 = vmatpush2.msra.mxu0 0.0
    %363 = vmatprep.subr.mxu0 0.0
    %364 = vmatpush2.msra.mxu0 0.0
    %365 = vmatprep.subr.mxu0 0.0
    %366 = vmatpush2.msra.mxu0 0.0
    %367 = vmatprep.subr.mxu0 0.0
    %368 = vmatpush2.msra.mxu0 0.0
    %369 = vmatprep.subr.mxu0 0.0
    %370 = vmatpush2.msra.mxu0 0.0
    %371 = vmatprep.subr.mxu0 0.0
    %372 = vmatpush2.msra.mxu0 0.0
    %373 = vmatprep.subr.mxu0 0.0
    %374 = vmatpush2.msra.mxu0 0.0
    %375 = vmatprep.subr.mxu0 0.0
    %376 = vmatpush2.msra.mxu0 0.0
    %377 = vmatprep.subr.mxu0 0.0
    %378 = vmatpush2.msra.mxu0 0.0
    %379 = vmatprep.subr.mxu0 0.0
    %380 = vmatpush2.msra.mxu0 0.0
    %381 = vmatprep.subr.mxu0 0.0
    %382 = vmatpush2.msra.mxu0 0.0
    %383 = vmatprep.mubr.f32.mxu0 0.0
    %384 = vmatmul.mubr.f32.gmra.mxu0 %v317
    %v385 = vpop.f32.mrf.mxu0
    %v386 = vadd.f32 %v314, %v385
    %v387 = vpop.f32.mrf.mxu0
    %388 = vdwg.mxu0
    %vm389 = vcmp.ge.f32.partialorder %v386, 0.0
    %v390 = vmul.f32 %v386, 0.01
    %v391 = vsel %vm389, %v386, %v390
    %392 = vst [vmem:[#allocation2] sm:$0xff] %v391
    // Predicated region
    $region38: #{tpu_custom_call.1} parent=1 // pred_check
      _
    $region39: #{tpu_custom_call.1} parent=1 // pred_check_branch
      %394 = sbr.rel (0) target = $region41
    $region40: #{tpu_custom_call.1} parent=1 // pred_region
      %s396 = ssub.s32 128, 16
      %397 = vsyncadd [#allocation3], %s396
      %s398 = sshll.u32 [#allocation2], 4
      %s399 = int_to_ptr.vmem [resolvable:$true] %s398
      %404 = dma.vmem_to_hbm [thread:$0]  %s399, 16, %s9, [#allocation3], 16, 16, 1
    $region41: #{tpu_custom_call.1} parent=1 // pred_fallthru
      _
    // Predicated region
    $region42: #{tpu_custom_call.1} parent=1 // pred_check
      _
    $region43: #{tpu_custom_call.1} parent=1 // pred_check_branch
      %406 = sbr.rel (0) target = $region45
    $region44: #{tpu_custom_call.1} parent=1 // pred_region
      %407 = dma.done [#allocation3], 128
    $region45: #{tpu_custom_call.1} parent=1 // pred_fallthru
      _
    %408 = vsyncpa [#allocation3], 1

</llo_original>
